<compile_context>
chip_gen: v5e
topology: v5e:2x2
jax: 0.10.0
libtpu: 0.0.40
codegen_flags: <defaults>
</compile_context>

<pallas_src>
import jax
import jax.numpy as jnp
from jax.experimental import pallas as pl
from jax.experimental.pallas import tpu as pltpu

N_IN = 6     # edge features
N_HID = 4    # hidden units
_SUB = 8             # sublanes per vreg
_LANE = 128          # lanes per vreg
_ALIGN = _SUB * _LANE  # 1024: edge-count granularity of a tile


def edge_predictor_kernel(x_ref, w1_ref, b1_ref, w2_ref, b2_ref, o_ref):
    # x_ref : VMEM (6, 1, 8, L)  per-feature slabs, edges packed sublane x lane
    # w1_ref: SMEM (24,)         W1 flattened row-major (out=4, in=6)
    # b1_ref: SMEM (4,)
    # w2_ref: SMEM (4,)          W2 (1, 4) flattened
    # b2_ref: SMEM (1,)
    # o_ref : VMEM (1, 8, L)     sigmoid outputs, same edge packing as x
    slab = o_ref.shape[1:]                            # (8, L)

    y = jnp.full(slab, b2_ref[0], jnp.float32)
    for j in range(N_HID):                            # fully unrolled: 4 hidden units
        h = jnp.full(slab, b1_ref[j], jnp.float32)
        for k in range(N_IN):                         # 6 input features
            # Read the feature slab straight from the ref at each use; Mosaic
            # schedules the VMEM loads against the FMA chain.
            h = h + w1_ref[N_IN * j + k] * x_ref[k, 0]
        h = jnp.maximum(h, 0.0)                       # ReLU
        y = y + w2_ref[j] * h

    # Exact sigmoid via a single EUP op: sigmoid(y) = 0.5*tanh(y/2) + 0.5.
    o_ref[0] = 0.5 * jnp.tanh(0.5 * y) + 0.5


def edge_predictor(x_edge, w1, b1, w2, b2, *, tile_n=131072):
    """x_edge: (N, 6). Weights in PyTorch layout: w1 (4,6), b1 (4,), w2 (1,4), b2 (1,).
    Returns (N, 1) float32 edge probabilities."""
    n, fin = x_edge.shape
    assert fin == N_IN

    # Balanced, (8*128)-aligned tiling of the edge axis.
    tile_n = max(_ALIGN, (int(tile_n) // _ALIGN) * _ALIGN)
    n_pad0 = max(_ALIGN, pl.cdiv(n, _ALIGN) * _ALIGN)
    grid_n = pl.cdiv(n_pad0, tile_n)
    # NOTE(v7x): 2 TensorCores per chip — for large expected N keep tile_n small
    # enough that grid_n >= 2 so the "parallel" axis shards across both TCs.
    tn = pl.cdiv(pl.cdiv(n_pad0, grid_n), _ALIGN) * _ALIGN   # balanced tile size
    n_pad = grid_n * tn
    lanes = tn // _SUB          # multiple of 128 since tn % 1024 == 0

    # Feature-major, zero-padded, packed as (6, G, 8, L).  pad + transpose fuse
    # into a single XLA pass; the row-major reshape afterwards is free.
    # TODO(synk): ideally the upstream producer emits x feature-major so this
    # transpose pass disappears entirely.
    x_pad = jnp.pad(x_edge.astype(jnp.float32), ((0, n_pad - n), (0, 0)))
    x_fm = x_pad.T.reshape(N_IN, grid_n, _SUB, lanes)

    w1f = w1.reshape(-1).astype(jnp.float32)   # (24,)
    b1f = b1.reshape(-1).astype(jnp.float32)   # (4,)
    w2f = w2.reshape(-1).astype(jnp.float32)   # (4,)
    b2f = b2.reshape(-1).astype(jnp.float32)   # (1,)

    out = pl.pallas_call(
        edge_predictor_kernel,
        out_shape=jax.ShapeDtypeStruct((grid_n, _SUB, lanes), jnp.float32),
        grid_spec=pltpu.PrefetchScalarGridSpec(
            num_scalar_prefetch=0,
            grid=(grid_n,),
            in_specs=[
                pl.BlockSpec((N_IN, 1, _SUB, lanes), lambda i: (0, i, 0, 0)),  # x tile
                pl.BlockSpec(memory_space=pltpu.MemorySpace.SMEM),             # w1
                pl.BlockSpec(memory_space=pltpu.MemorySpace.SMEM),             # b1
                pl.BlockSpec(memory_space=pltpu.MemorySpace.SMEM),             # w2
                pl.BlockSpec(memory_space=pltpu.MemorySpace.SMEM),             # b2
            ],
            out_specs=pl.BlockSpec((1, _SUB, lanes), lambda i: (i, 0, 0)),
        ),
        compiler_params=pltpu.CompilerParams(
            dimension_semantics=("parallel",),
        ),
        cost_estimate=pl.CostEstimate(
            flops=56 * n_pad,
            transcendentals=n_pad,
            bytes_accessed=(N_IN * 4 + 4) * n_pad,
        ),
    )(x_fm, w1f, b1f, w2f, b2f)

    # (n, 1) to match the PyTorch module.  Callers that can consume the padded
    # lane-dense layout directly should take `out` as-is and skip this pass.
    return out.reshape(n_pad)[:n].reshape(n, 1)


def init_params(key):
    """Deterministic init mimicking PyTorch nn.Linear defaults, PyTorch layout."""
    k1, k2, k3, k4 = jax.random.split(key, 4)
    bound1 = 1.0 / jnp.sqrt(6.0)
    bound2 = 1.0 / jnp.sqrt(4.0)
    w1 = jax.random.uniform(k1, (4, 6), jnp.float32, -bound1, bound1)
    b1 = jax.random.uniform(k2, (4,), jnp.float32, -bound1, bound1)
    w2 = jax.random.uniform(k3, (1, 4), jnp.float32, -bound2, bound2)
    b2 = jax.random.uniform(k4, (1,), jnp.float32, -bound2, bound2)
    return w1, b1, w2, b2


def edge_predictor_ref(x, w1, b1, w2, b2):
    h = jnp.maximum(
        jnp.dot(x, w1.T, precision=jax.lax.Precision.HIGHEST) + b1, 0.0)
    return jax.nn.sigmoid(
        jnp.dot(h, w2.T, precision=jax.lax.Precision.HIGHEST) + b2)


if __name__ == "__main__":
    key = jax.random.PRNGKey(0)
    kx, kp = jax.random.split(key)

    n_edges = 200                       # small, deliberately NOT a multiple of 128
    x_edge = jax.random.normal(kx, (n_edges, N_IN), jnp.float32)
    w1, b1, w2, b2 = init_params(kp)

    out = edge_predictor(x_edge, w1, b1, w2, b2)
    out = jax.block_until_ready(out)

    ref = edge_predictor_ref(x_edge, w1, b1, w2, b2)
    assert out.shape == (n_edges, 1)
    # Exact (tanh-based) sigmoid -> tight tolerance.
    assert jnp.allclose(out, ref, atol=1e-5, rtol=1e-5), float(
        jnp.max(jnp.abs(out - ref)))

    print("KERNEL_OK")
</pallas_src>

<mosaic_0001>
module attributes {stable_mosaic.version = 11 : i64} {
  func.func @edge_predictor_kernel(%arg0: i32, %arg1: memref<6x1x8x128xf32, #tpu.memory_space<vmem>>, %arg2: memref<24xf32, #tpu.memory_space<smem>>, %arg3: memref<4xf32, #tpu.memory_space<smem>>, %arg4: memref<4xf32, #tpu.memory_space<smem>>, %arg5: memref<1xf32, #tpu.memory_space<smem>>, %arg6: memref<1x8x128xf32, #tpu.memory_space<vmem>>) attributes {dimension_semantics = [#tpu.dimension_semantics<parallel>], iteration_bounds = array<i64: 1>, scalar_prefetch = 0 : i64, scratch_operands = 0 : i64, tpu.core_type = #tpu.core_type<tc>, window_params = [{transform_indices = @transform_0, window_bounds = array<i64: 6, 1, 8, 128>}, {transform_indices = @transform_1, window_bounds = array<i64: 24>}, {transform_indices = @transform_2, window_bounds = array<i64: 4>}, {transform_indices = @transform_3, window_bounds = array<i64: 4>}, {transform_indices = @transform_4, window_bounds = array<i64: 1>}, {transform_indices = @transform_5, window_bounds = array<i64: 1, 8, 128>}]} {
    %c0 = arith.constant 0 : index
    %0 = memref.load %arg5[%c0] : memref<1xf32, #tpu.memory_space<smem>>
    %1 = vector.broadcast %0 : f32 to vector<8x128xf32>
    %c0_0 = arith.constant 0 : index
    %2 = memref.load %arg3[%c0_0] : memref<4xf32, #tpu.memory_space<smem>>
    %3 = vector.broadcast %2 : f32 to vector<8x128xf32>
    %c0_1 = arith.constant 0 : index
    %4 = memref.load %arg2[%c0_1] : memref<24xf32, #tpu.memory_space<smem>>
    %c0_2 = arith.constant 0 : index
    %c0_3 = arith.constant 0 : index
    %c0_4 = arith.constant 0 : index
    %c0_5 = arith.constant 0 : index
    %5 = vector.load %arg1[%c0_2, %c0_3, %c0_4, %c0_5] : memref<6x1x8x128xf32, #tpu.memory_space<vmem>>, vector<1x1x8x128xf32>
    %6 = vector.shape_cast %5 : vector<1x1x8x128xf32> to vector<8x128xf32>
    %7 = vector.broadcast %4 : f32 to vector<8x128xf32>
    %8 = arith.mulf %7, %6 : vector<8x128xf32>
    %9 = arith.addf %3, %8 : vector<8x128xf32>
    %c1 = arith.constant 1 : index
    %10 = memref.load %arg2[%c1] : memref<24xf32, #tpu.memory_space<smem>>
    %c1_6 = arith.constant 1 : index
    %c0_7 = arith.constant 0 : index
    %c0_8 = arith.constant 0 : index
    %c0_9 = arith.constant 0 : index
    %11 = vector.load %arg1[%c1_6, %c0_7, %c0_8, %c0_9] : memref<6x1x8x128xf32, #tpu.memory_space<vmem>>, vector<1x1x8x128xf32>
    %12 = vector.shape_cast %11 : vector<1x1x8x128xf32> to vector<8x128xf32>
    %13 = vector.broadcast %10 : f32 to vector<8x128xf32>
    %14 = arith.mulf %13, %12 : vector<8x128xf32>
    %15 = arith.addf %9, %14 : vector<8x128xf32>
    %c2 = arith.constant 2 : index
    %16 = memref.load %arg2[%c2] : memref<24xf32, #tpu.memory_space<smem>>
    %c2_10 = arith.constant 2 : index
    %c0_11 = arith.constant 0 : index
    %c0_12 = arith.constant 0 : index
    %c0_13 = arith.constant 0 : index
    %17 = vector.load %arg1[%c2_10, %c0_11, %c0_12, %c0_13] : memref<6x1x8x128xf32, #tpu.memory_space<vmem>>, vector<1x1x8x128xf32>
    %18 = vector.shape_cast %17 : vector<1x1x8x128xf32> to vector<8x128xf32>
    %19 = vector.broadcast %16 : f32 to vector<8x128xf32>
    %20 = arith.mulf %19, %18 : vector<8x128xf32>
    %21 = arith.addf %15, %20 : vector<8x128xf32>
    %c3 = arith.constant 3 : index
    %22 = memref.load %arg2[%c3] : memref<24xf32, #tpu.memory_space<smem>>
    %c3_14 = arith.constant 3 : index
    %c0_15 = arith.constant 0 : index
    %c0_16 = arith.constant 0 : index
    %c0_17 = arith.constant 0 : index
    %23 = vector.load %arg1[%c3_14, %c0_15, %c0_16, %c0_17] : memref<6x1x8x128xf32, #tpu.memory_space<vmem>>, vector<1x1x8x128xf32>
    %24 = vector.shape_cast %23 : vector<1x1x8x128xf32> to vector<8x128xf32>
    %25 = vector.broadcast %22 : f32 to vector<8x128xf32>
    %26 = arith.mulf %25, %24 : vector<8x128xf32>
    %27 = arith.addf %21, %26 : vector<8x128xf32>
    %c4 = arith.constant 4 : index
    %28 = memref.load %arg2[%c4] : memref<24xf32, #tpu.memory_space<smem>>
    %c4_18 = arith.constant 4 : index
    %c0_19 = arith.constant 0 : index
    %c0_20 = arith.constant 0 : index
    %c0_21 = arith.constant 0 : index
    %29 = vector.load %arg1[%c4_18, %c0_19, %c0_20, %c0_21] : memref<6x1x8x128xf32, #tpu.memory_space<vmem>>, vector<1x1x8x128xf32>
    %30 = vector.shape_cast %29 : vector<1x1x8x128xf32> to vector<8x128xf32>
    %31 = vector.broadcast %28 : f32 to vector<8x128xf32>
    %32 = arith.mulf %31, %30 : vector<8x128xf32>
    %33 = arith.addf %27, %32 : vector<8x128xf32>
    %c5 = arith.constant 5 : index
    %34 = memref.load %arg2[%c5] : memref<24xf32, #tpu.memory_space<smem>>
    %c5_22 = arith.constant 5 : index
    %c0_23 = arith.constant 0 : index
    %c0_24 = arith.constant 0 : index
    %c0_25 = arith.constant 0 : index
    %35 = vector.load %arg1[%c5_22, %c0_23, %c0_24, %c0_25] : memref<6x1x8x128xf32, #tpu.memory_space<vmem>>, vector<1x1x8x128xf32>
    %36 = vector.shape_cast %35 : vector<1x1x8x128xf32> to vector<8x128xf32>
    %37 = vector.broadcast %34 : f32 to vector<8x128xf32>
    %38 = arith.mulf %37, %36 : vector<8x128xf32>
    %39 = arith.addf %33, %38 : vector<8x128xf32>
    %cst = arith.constant 0.000000e+00 : f32
    %40 = vector.broadcast %cst : f32 to vector<8x128xf32>
    %41 = arith.maximumf %39, %40 : vector<8x128xf32>
    %c0_26 = arith.constant 0 : index
    %42 = memref.load %arg4[%c0_26] : memref<4xf32, #tpu.memory_space<smem>>
    %43 = vector.broadcast %42 : f32 to vector<8x128xf32>
    %44 = arith.mulf %43, %41 : vector<8x128xf32>
    %45 = arith.addf %1, %44 : vector<8x128xf32>
    %c1_27 = arith.constant 1 : index
    %46 = memref.load %arg3[%c1_27] : memref<4xf32, #tpu.memory_space<smem>>
    %47 = vector.broadcast %46 : f32 to vector<8x128xf32>
    %c6 = arith.constant 6 : index
    %48 = memref.load %arg2[%c6] : memref<24xf32, #tpu.memory_space<smem>>
    %c0_28 = arith.constant 0 : index
    %c0_29 = arith.constant 0 : index
    %c0_30 = arith.constant 0 : index
    %c0_31 = arith.constant 0 : index
    %49 = vector.load %arg1[%c0_28, %c0_29, %c0_30, %c0_31] : memref<6x1x8x128xf32, #tpu.memory_space<vmem>>, vector<1x1x8x128xf32>
    %50 = vector.shape_cast %49 : vector<1x1x8x128xf32> to vector<8x128xf32>
    %51 = vector.broadcast %48 : f32 to vector<8x128xf32>
    %52 = arith.mulf %51, %50 : vector<8x128xf32>
    %53 = arith.addf %47, %52 : vector<8x128xf32>
    %c7 = arith.constant 7 : index
    %54 = memref.load %arg2[%c7] : memref<24xf32, #tpu.memory_space<smem>>
    %c1_32 = arith.constant 1 : index
    %c0_33 = arith.constant 0 : index
    %c0_34 = arith.constant 0 : index
    %c0_35 = arith.constant 0 : index
    %55 = vector.load %arg1[%c1_32, %c0_33, %c0_34, %c0_35] : memref<6x1x8x128xf32, #tpu.memory_space<vmem>>, vector<1x1x8x128xf32>
    %56 = vector.shape_cast %55 : vector<1x1x8x128xf32> to vector<8x128xf32>
    %57 = vector.broadcast %54 : f32 to vector<8x128xf32>
    %58 = arith.mulf %57, %56 : vector<8x128xf32>
    %59 = arith.addf %53, %58 : vector<8x128xf32>
    %c8 = arith.constant 8 : index
    %60 = memref.load %arg2[%c8] : memref<24xf32, #tpu.memory_space<smem>>
    %c2_36 = arith.constant 2 : index
    %c0_37 = arith.constant 0 : index
    %c0_38 = arith.constant 0 : index
    %c0_39 = arith.constant 0 : index
    %61 = vector.load %arg1[%c2_36, %c0_37, %c0_38, %c0_39] : memref<6x1x8x128xf32, #tpu.memory_space<vmem>>, vector<1x1x8x128xf32>
    %62 = vector.shape_cast %61 : vector<1x1x8x128xf32> to vector<8x128xf32>
    %63 = vector.broadcast %60 : f32 to vector<8x128xf32>
    %64 = arith.mulf %63, %62 : vector<8x128xf32>
    %65 = arith.addf %59, %64 : vector<8x128xf32>
    %c9 = arith.constant 9 : index
    %66 = memref.load %arg2[%c9] : memref<24xf32, #tpu.memory_space<smem>>
    %c3_40 = arith.constant 3 : index
    %c0_41 = arith.constant 0 : index
    %c0_42 = arith.constant 0 : index
    %c0_43 = arith.constant 0 : index
    %67 = vector.load %arg1[%c3_40, %c0_41, %c0_42, %c0_43] : memref<6x1x8x128xf32, #tpu.memory_space<vmem>>, vector<1x1x8x128xf32>
    %68 = vector.shape_cast %67 : vector<1x1x8x128xf32> to vector<8x128xf32>
    %69 = vector.broadcast %66 : f32 to vector<8x128xf32>
    %70 = arith.mulf %69, %68 : vector<8x128xf32>
    %71 = arith.addf %65, %70 : vector<8x128xf32>
    %c10 = arith.constant 10 : index
    %72 = memref.load %arg2[%c10] : memref<24xf32, #tpu.memory_space<smem>>
    %c4_44 = arith.constant 4 : index
    %c0_45 = arith.constant 0 : index
    %c0_46 = arith.constant 0 : index
    %c0_47 = arith.constant 0 : index
    %73 = vector.load %arg1[%c4_44, %c0_45, %c0_46, %c0_47] : memref<6x1x8x128xf32, #tpu.memory_space<vmem>>, vector<1x1x8x128xf32>
    %74 = vector.shape_cast %73 : vector<1x1x8x128xf32> to vector<8x128xf32>
    %75 = vector.broadcast %72 : f32 to vector<8x128xf32>
    %76 = arith.mulf %75, %74 : vector<8x128xf32>
    %77 = arith.addf %71, %76 : vector<8x128xf32>
    %c11 = arith.constant 11 : index
    %78 = memref.load %arg2[%c11] : memref<24xf32, #tpu.memory_space<smem>>
    %c5_48 = arith.constant 5 : index
    %c0_49 = arith.constant 0 : index
    %c0_50 = arith.constant 0 : index
    %c0_51 = arith.constant 0 : index
    %79 = vector.load %arg1[%c5_48, %c0_49, %c0_50, %c0_51] : memref<6x1x8x128xf32, #tpu.memory_space<vmem>>, vector<1x1x8x128xf32>
    %80 = vector.shape_cast %79 : vector<1x1x8x128xf32> to vector<8x128xf32>
    %81 = vector.broadcast %78 : f32 to vector<8x128xf32>
    %82 = arith.mulf %81, %80 : vector<8x128xf32>
    %83 = arith.addf %77, %82 : vector<8x128xf32>
    %cst_52 = arith.constant 0.000000e+00 : f32
    %84 = vector.broadcast %cst_52 : f32 to vector<8x128xf32>
    %85 = arith.maximumf %83, %84 : vector<8x128xf32>
    %c1_53 = arith.constant 1 : index
    %86 = memref.load %arg4[%c1_53] : memref<4xf32, #tpu.memory_space<smem>>
    %87 = vector.broadcast %86 : f32 to vector<8x128xf32>
    %88 = arith.mulf %87, %85 : vector<8x128xf32>
    %89 = arith.addf %45, %88 : vector<8x128xf32>
    %c2_54 = arith.constant 2 : index
    %90 = memref.load %arg3[%c2_54] : memref<4xf32, #tpu.memory_space<smem>>
    %91 = vector.broadcast %90 : f32 to vector<8x128xf32>
    %c12 = arith.constant 12 : index
    %92 = memref.load %arg2[%c12] : memref<24xf32, #tpu.memory_space<smem>>
    %c0_55 = arith.constant 0 : index
    %c0_56 = arith.constant 0 : index
    %c0_57 = arith.constant 0 : index
    %c0_58 = arith.constant 0 : index
    %93 = vector.load %arg1[%c0_55, %c0_56, %c0_57, %c0_58] : memref<6x1x8x128xf32, #tpu.memory_space<vmem>>, vector<1x1x8x128xf32>
    %94 = vector.shape_cast %93 : vector<1x1x8x128xf32> to vector<8x128xf32>
    %95 = vector.broadcast %92 : f32 to vector<8x128xf32>
    %96 = arith.mulf %95, %94 : vector<8x128xf32>
    %97 = arith.addf %91, %96 : vector<8x128xf32>
    %c13 = arith.constant 13 : index
    %98 = memref.load %arg2[%c13] : memref<24xf32, #tpu.memory_space<smem>>
    %c1_59 = arith.constant 1 : index
    %c0_60 = arith.constant 0 : index
    %c0_61 = arith.constant 0 : index
    %c0_62 = arith.constant 0 : index
    %99 = vector.load %arg1[%c1_59, %c0_60, %c0_61, %c0_62] : memref<6x1x8x128xf32, #tpu.memory_space<vmem>>, vector<1x1x8x128xf32>
    %100 = vector.shape_cast %99 : vector<1x1x8x128xf32> to vector<8x128xf32>
    %101 = vector.broadcast %98 : f32 to vector<8x128xf32>
    %102 = arith.mulf %101, %100 : vector<8x128xf32>
    %103 = arith.addf %97, %102 : vector<8x128xf32>
    %c14 = arith.constant 14 : index
    %104 = memref.load %arg2[%c14] : memref<24xf32, #tpu.memory_space<smem>>
    %c2_63 = arith.constant 2 : index
    %c0_64 = arith.constant 0 : index
    %c0_65 = arith.constant 0 : index
    %c0_66 = arith.constant 0 : index
    %105 = vector.load %arg1[%c2_63, %c0_64, %c0_65, %c0_66] : memref<6x1x8x128xf32, #tpu.memory_space<vmem>>, vector<1x1x8x128xf32>
    %106 = vector.shape_cast %105 : vector<1x1x8x128xf32> to vector<8x128xf32>
    %107 = vector.broadcast %104 : f32 to vector<8x128xf32>
    %108 = arith.mulf %107, %106 : vector<8x128xf32>
    %109 = arith.addf %103, %108 : vector<8x128xf32>
    %c15 = arith.constant 15 : index
    %110 = memref.load %arg2[%c15] : memref<24xf32, #tpu.memory_space<smem>>
    %c3_67 = arith.constant 3 : index
    %c0_68 = arith.constant 0 : index
    %c0_69 = arith.constant 0 : index
    %c0_70 = arith.constant 0 : index
    %111 = vector.load %arg1[%c3_67, %c0_68, %c0_69, %c0_70] : memref<6x1x8x128xf32, #tpu.memory_space<vmem>>, vector<1x1x8x128xf32>
    %112 = vector.shape_cast %111 : vector<1x1x8x128xf32> to vector<8x128xf32>
    %113 = vector.broadcast %110 : f32 to vector<8x128xf32>
    %114 = arith.mulf %113, %112 : vector<8x128xf32>
    %115 = arith.addf %109, %114 : vector<8x128xf32>
    %c16 = arith.constant 16 : index
    %116 = memref.load %arg2[%c16] : memref<24xf32, #tpu.memory_space<smem>>
    %c4_71 = arith.constant 4 : index
    %c0_72 = arith.constant 0 : index
    %c0_73 = arith.constant 0 : index
    %c0_74 = arith.constant 0 : index
    %117 = vector.load %arg1[%c4_71, %c0_72, %c0_73, %c0_74] : memref<6x1x8x128xf32, #tpu.memory_space<vmem>>, vector<1x1x8x128xf32>
    %118 = vector.shape_cast %117 : vector<1x1x8x128xf32> to vector<8x128xf32>
    %119 = vector.broadcast %116 : f32 to vector<8x128xf32>
    %120 = arith.mulf %119, %118 : vector<8x128xf32>
    %121 = arith.addf %115, %120 : vector<8x128xf32>
    %c17 = arith.constant 17 : index
    %122 = memref.load %arg2[%c17] : memref<24xf32, #tpu.memory_space<smem>>
    %c5_75 = arith.constant 5 : index
    %c0_76 = arith.constant 0 : index
    %c0_77 = arith.constant 0 : index
    %c0_78 = arith.constant 0 : index
    %123 = vector.load %arg1[%c5_75, %c0_76, %c0_77, %c0_78] : memref<6x1x8x128xf32, #tpu.memory_space<vmem>>, vector<1x1x8x128xf32>
    %124 = vector.shape_cast %123 : vector<1x1x8x128xf32> to vector<8x128xf32>
    %125 = vector.broadcast %122 : f32 to vector<8x128xf32>
    %126 = arith.mulf %125, %124 : vector<8x128xf32>
    %127 = arith.addf %121, %126 : vector<8x128xf32>
    %cst_79 = arith.constant 0.000000e+00 : f32
    %128 = vector.broadcast %cst_79 : f32 to vector<8x128xf32>
    %129 = arith.maximumf %127, %128 : vector<8x128xf32>
    %c2_80 = arith.constant 2 : index
    %130 = memref.load %arg4[%c2_80] : memref<4xf32, #tpu.memory_space<smem>>
    %131 = vector.broadcast %130 : f32 to vector<8x128xf32>
    %132 = arith.mulf %131, %129 : vector<8x128xf32>
    %133 = arith.addf %89, %132 : vector<8x128xf32>
    %c3_81 = arith.constant 3 : index
    %134 = memref.load %arg3[%c3_81] : memref<4xf32, #tpu.memory_space<smem>>
    %135 = vector.broadcast %134 : f32 to vector<8x128xf32>
    %c18 = arith.constant 18 : index
    %136 = memref.load %arg2[%c18] : memref<24xf32, #tpu.memory_space<smem>>
    %c0_82 = arith.constant 0 : index
    %c0_83 = arith.constant 0 : index
    %c0_84 = arith.constant 0 : index
    %c0_85 = arith.constant 0 : index
    %137 = vector.load %arg1[%c0_82, %c0_83, %c0_84, %c0_85] : memref<6x1x8x128xf32, #tpu.memory_space<vmem>>, vector<1x1x8x128xf32>
    %138 = vector.shape_cast %137 : vector<1x1x8x128xf32> to vector<8x128xf32>
    %139 = vector.broadcast %136 : f32 to vector<8x128xf32>
    %140 = arith.mulf %139, %138 : vector<8x128xf32>
    %141 = arith.addf %135, %140 : vector<8x128xf32>
    %c19 = arith.constant 19 : index
    %142 = memref.load %arg2[%c19] : memref<24xf32, #tpu.memory_space<smem>>
    %c1_86 = arith.constant 1 : index
    %c0_87 = arith.constant 0 : index
    %c0_88 = arith.constant 0 : index
    %c0_89 = arith.constant 0 : index
    %143 = vector.load %arg1[%c1_86, %c0_87, %c0_88, %c0_89] : memref<6x1x8x128xf32, #tpu.memory_space<vmem>>, vector<1x1x8x128xf32>
    %144 = vector.shape_cast %143 : vector<1x1x8x128xf32> to vector<8x128xf32>
    %145 = vector.broadcast %142 : f32 to vector<8x128xf32>
    %146 = arith.mulf %145, %144 : vector<8x128xf32>
    %147 = arith.addf %141, %146 : vector<8x128xf32>
    %c20 = arith.constant 20 : index
    %148 = memref.load %arg2[%c20] : memref<24xf32, #tpu.memory_space<smem>>
    %c2_90 = arith.constant 2 : index
    %c0_91 = arith.constant 0 : index
    %c0_92 = arith.constant 0 : index
    %c0_93 = arith.constant 0 : index
    %149 = vector.load %arg1[%c2_90, %c0_91, %c0_92, %c0_93] : memref<6x1x8x128xf32, #tpu.memory_space<vmem>>, vector<1x1x8x128xf32>
    %150 = vector.shape_cast %149 : vector<1x1x8x128xf32> to vector<8x128xf32>
    %151 = vector.broadcast %148 : f32 to vector<8x128xf32>
    %152 = arith.mulf %151, %150 : vector<8x128xf32>
    %153 = arith.addf %147, %152 : vector<8x128xf32>
    %c21 = arith.constant 21 : index
    %154 = memref.load %arg2[%c21] : memref<24xf32, #tpu.memory_space<smem>>
    %c3_94 = arith.constant 3 : index
    %c0_95 = arith.constant 0 : index
    %c0_96 = arith.constant 0 : index
    %c0_97 = arith.constant 0 : index
    %155 = vector.load %arg1[%c3_94, %c0_95, %c0_96, %c0_97] : memref<6x1x8x128xf32, #tpu.memory_space<vmem>>, vector<1x1x8x128xf32>
    %156 = vector.shape_cast %155 : vector<1x1x8x128xf32> to vector<8x128xf32>
    %157 = vector.broadcast %154 : f32 to vector<8x128xf32>
    %158 = arith.mulf %157, %156 : vector<8x128xf32>
    %159 = arith.addf %153, %158 : vector<8x128xf32>
    %c22 = arith.constant 22 : index
    %160 = memref.load %arg2[%c22] : memref<24xf32, #tpu.memory_space<smem>>
    %c4_98 = arith.constant 4 : index
    %c0_99 = arith.constant 0 : index
    %c0_100 = arith.constant 0 : index
    %c0_101 = arith.constant 0 : index
    %161 = vector.load %arg1[%c4_98, %c0_99, %c0_100, %c0_101] : memref<6x1x8x128xf32, #tpu.memory_space<vmem>>, vector<1x1x8x128xf32>
    %162 = vector.shape_cast %161 : vector<1x1x8x128xf32> to vector<8x128xf32>
    %163 = vector.broadcast %160 : f32 to vector<8x128xf32>
    %164 = arith.mulf %163, %162 : vector<8x128xf32>
    %165 = arith.addf %159, %164 : vector<8x128xf32>
    %c23 = arith.constant 23 : index
    %166 = memref.load %arg2[%c23] : memref<24xf32, #tpu.memory_space<smem>>
    %c5_102 = arith.constant 5 : index
    %c0_103 = arith.constant 0 : index
    %c0_104 = arith.constant 0 : index
    %c0_105 = arith.constant 0 : index
    %167 = vector.load %arg1[%c5_102, %c0_103, %c0_104, %c0_105] : memref<6x1x8x128xf32, #tpu.memory_space<vmem>>, vector<1x1x8x128xf32>
    %168 = vector.shape_cast %167 : vector<1x1x8x128xf32> to vector<8x128xf32>
    %169 = vector.broadcast %166 : f32 to vector<8x128xf32>
    %170 = arith.mulf %169, %168 : vector<8x128xf32>
    %171 = arith.addf %165, %170 : vector<8x128xf32>
    %cst_106 = arith.constant 0.000000e+00 : f32
    %172 = vector.broadcast %cst_106 : f32 to vector<8x128xf32>
    %173 = arith.maximumf %171, %172 : vector<8x128xf32>
    %c3_107 = arith.constant 3 : index
    %174 = memref.load %arg4[%c3_107] : memref<4xf32, #tpu.memory_space<smem>>
    %175 = vector.broadcast %174 : f32 to vector<8x128xf32>
    %176 = arith.mulf %175, %173 : vector<8x128xf32>
    %177 = arith.addf %133, %176 : vector<8x128xf32>
    %cst_108 = arith.constant 5.000000e-01 : f32
    %178 = vector.broadcast %cst_108 : f32 to vector<8x128xf32>
    %179 = arith.mulf %178, %177 : vector<8x128xf32>
    %180 = math.tanh %179 : vector<8x128xf32>
    %cst_109 = arith.constant 5.000000e-01 : f32
    %181 = vector.broadcast %cst_109 : f32 to vector<8x128xf32>
    %182 = arith.mulf %181, %180 : vector<8x128xf32>
    %cst_110 = arith.constant 5.000000e-01 : f32
    %183 = vector.broadcast %cst_110 : f32 to vector<8x128xf32>
    %184 = arith.addf %182, %183 : vector<8x128xf32>
    %c0_111 = arith.constant 0 : index
    %c0_112 = arith.constant 0 : index
    %c0_113 = arith.constant 0 : index
    %185 = vector.load %arg6[%c0_111, %c0_112, %c0_113] : memref<1x8x128xf32, #tpu.memory_space<vmem>>, vector<1x8x128xf32>
    %186 = vector.shape_cast %185 : vector<1x8x128xf32> to vector<8x128xf32>
    %187 = vector.shape_cast %184 : vector<8x128xf32> to vector<1x8x128xf32>
    tpu.vector_store %arg6[%c0_111, %c0_112, %c0_113], %187 {strides = array<i32>} : memref<1x8x128xf32, #tpu.memory_space<vmem>>, vector<1x8x128xf32>,
    return
  }
  func.func @transform_0(%arg0: i32) -> (i32, i32, i32, i32) {
    %c0_i32 = arith.constant 0 : i32
    %c0_i32_0 = arith.constant 0 : i32
    %c0_i32_1 = arith.constant 0 : i32
    %c0_i32_2 = arith.constant 0 : i32
    return %c0_i32, %arg0, %c0_i32_0, %c0_i32_1 : i32, i32, i32, i32
  }
  func.func @transform_1(%arg0: i32) -> i32 {
    %c0_i32 = arith.constant 0 : i32
    %c0_i32_0 = arith.constant 0 : i32
    return %c0_i32 : i32
  }
  func.func @transform_2(%arg0: i32) -> i32 {
    %c0_i32 = arith.constant 0 : i32
    %c0_i32_0 = arith.constant 0 : i32
    return %c0_i32 : i32
  }
  func.func @transform_3(%arg0: i32) -> i32 {
    %c0_i32 = arith.constant 0 : i32
    %c0_i32_0 = arith.constant 0 : i32
    return %c0_i32 : i32
  }
  func.func @transform_4(%arg0: i32) -> i32 {
    %c0_i32 = arith.constant 0 : i32
    %c0_i32_0 = arith.constant 0 : i32
    return %c0_i32 : i32
  }
  func.func @transform_5(%arg0: i32) -> (i32, i32, i32) {
    %c0_i32 = arith.constant 0 : i32
    %c0_i32_0 = arith.constant 0 : i32
    %c0_i32_1 = arith.constant 0 : i32
    return %arg0, %c0_i32, %c0_i32_0 : i32, i32, i32
  }
}

</mosaic_0001>

<llo_original>
// kernel: tpu_custom_call.1
$region0: #{tpu_custom_call.1}
  #allocation0 [shape = 'u32[]', space=smem, size = 0x4, offset = 0x4, fixed_abs, tag = 'smem constant byte address 0x4 - core index']
  #allocation1 [shape = 'u32[72,128]{1,0:T(1,128)}', space=vmem, size = 0x9000, scoped, tag = 'internal scratch']
  #allocation2 [shape = 'f32[1]{0:T(128)S(6)}', space=smem, size = 0x200, scoped, tag = 'scoped memory for tpu_custom_call.1']
  %s0 = inlined_call_operand.hbm [shape: f32[6,1,8,128], index: 0, kind: input, shape index: {}]
  %s1 = inlined_call_operand.vmem [shape: f32[24], index: 1, kind: input, shape index: {}]
  %s2 = inlined_call_operand.vmem [shape: f32[4], index: 2, kind: input, shape index: {}]
  %s3 = inlined_call_operand.vmem [shape: f32[4], index: 3, kind: input, shape index: {}]
  %s4 = inlined_call_operand.<no memory space> [shape: f32[1], index: 4, kind: input, shape index: {}]
  %s5 = inlined_call_operand.hbm [shape: f32[1,8,128], index: 5, kind: output, shape index: {}]
  %s6 = sld [smem:[#allocation0]]
  $region46: #{tpu_custom_call.1} parent=0
    _
  %s8 = ssub.s32 1, %s6
  %s9 = scalar_select 0, %s8, %s6
  %10 = sst [smem:[#allocation2]] %s4
  $region1: #{tpu_custom_call.1} parent=0
    #allocation3 [shape = 'u8[24576]{0}', space=vmem, size = 0x6000, scoped, tag = 'input window, operand 0, single buffered']
    #allocation4 [shape = 's32[1]{0}', space=sflag, size = 0x4, scoped, tag = 'scoped memory for tpu_custom_call.1']
    #allocation5 [shape = 's32[1]{0}', space=sflag, size = 0x4, scoped, tag = 'scoped memory for tpu_custom_call.1']
    #allocation6 [shape = 's32[1]{0}', space=sflag, size = 0x4, scoped, tag = 'scoped memory for tpu_custom_call.1']
    #allocation7 [shape = 'u8[512]{0}', space=smem, size = 0x200, scoped, tag = 'input window, operand 1, single buffered']
    #allocation8 [shape = 'u8[512]{0}', space=smem, size = 0x200, scoped, tag = 'input window, operand 2, single buffered']
    #allocation9 [shape = 's32[1]{0}', space=sflag, size = 0x4, scoped, tag = 'scoped memory for tpu_custom_call.1']
    #allocation10 [shape = 'u8[512]{0}', space=smem, size = 0x200, scoped, tag = 'input window, operand 3, single buffered']
    #allocation11 [shape = 'u8[4096]{0}', space=vmem, size = 0x1000, scoped, tag = 'output window, operand 0, single buffered']
    %11 = vsyncpa [#allocation4], 0
    %12 = vsyncpa [#allocation6], 0
    %13 = vsyncpa [#allocation9], 0
    %14 = vsyncpa [#allocation5], 0
    // Predicated region
    $region2: #{tpu_custom_call.1} parent=1 // pred_check
      _
    $region3: #{tpu_custom_call.1} parent=1 // pred_check_branch
      %16 = sbr.rel (0) target = $region5
    $region4: #{tpu_custom_call.1} parent=1 // pred_region
      %18 = vsyncadd [#allocation4], 0
      %s19 = sshll.u32 %s0, 4
      %s20 = int_to_ptr.hbm [resolvable:$true] %s19
      %s21 = sshll.u32 [#allocation3], 4
      %s22 = int_to_ptr.vmem [resolvable:$true] %s21
      %27 = dma.hbm_to_vmem [thread:$0]  %s20, 768, %s22, [#allocation4], 128, 128, 8
    $region5: #{tpu_custom_call.1} parent=1 // pred_fallthru
      _
    // Predicated region
    $region6: #{tpu_custom_call.1} parent=1 // pred_check
      _
    $region7: #{tpu_custom_call.1} parent=1 // pred_check_branch
      %29 = sbr.rel (0) target = $region9
    $region8: #{tpu_custom_call.1} parent=1 // pred_region
      %31 = vsyncadd [#allocation6], 0
      %s33 = sshll.u32 %s1, 4
      %s34 = int_to_ptr.vmem [resolvable:$true] %s33
      %36 = dma.vmem_to_smem %s34, 16, [#allocation7], [#allocation6]
    $region9: #{tpu_custom_call.1} parent=1 // pred_fallthru
      _
    // Predicated region
    $region10: #{tpu_custom_call.1} parent=1 // pred_check
      _
    $region11: #{tpu_custom_call.1} parent=1 // pred_check_branch
      %38 = sbr.rel (0) target = $region13
    $region12: #{tpu_custom_call.1} parent=1 // pred_region
      %40 = vsyncadd [#allocation9], 0
      %s42 = sshll.u32 %s2, 4
      %s43 = int_to_ptr.vmem [resolvable:$true] %s42
      %45 = dma.vmem_to_smem %s43, 16, [#allocation8], [#allocation9]
    $region13: #{tpu_custom_call.1} parent=1 // pred_fallthru
      _
    // Predicated region
    $region14: #{tpu_custom_call.1} parent=1 // pred_check
      _
    $region15: #{tpu_custom_call.1} parent=1 // pred_check_branch
      %47 = sbr.rel (0) target = $region17
    $region16: #{tpu_custom_call.1} parent=1 // pred_region
      %49 = vsyncadd [#allocation9], 0
      %s51 = sshll.u32 %s3, 4
      %s52 = int_to_ptr.vmem [resolvable:$true] %s51
      %54 = dma.vmem_to_smem %s52, 16, [#allocation10], [#allocation9]
    $region17: #{tpu_custom_call.1} parent=1 // pred_fallthru
      _
    // Predicated region
    $region18: #{tpu_custom_call.1} parent=1 // pred_check
      _
    $region19: #{tpu_custom_call.1} parent=1 // pred_check_branch
      %56 = sbr.rel (0) target = $region21
    $region20: #{tpu_custom_call.1} parent=1 // pred_region
      _
    $region21: #{tpu_custom_call.1} parent=1 // pred_fallthru
      _
    // Predicated region
    $region22: #{tpu_custom_call.1} parent=1 // pred_check
      _
    $region23: #{tpu_custom_call.1} parent=1 // pred_check_branch
      %58 = sbr.rel (0) target = $region25
    $region24: #{tpu_custom_call.1} parent=1 // pred_region
      %60 = dma.done [#allocation4], 768
    $region25: #{tpu_custom_call.1} parent=1 // pred_fallthru
      _
    // Predicated region
    $region26: #{tpu_custom_call.1} parent=1 // pred_check
      _
    $region27: #{tpu_custom_call.1} parent=1 // pred_check_branch
      %62 = sbr.rel (0) target = $region29
    $region28: #{tpu_custom_call.1} parent=1 // pred_region
      %64 = dma.done [#allocation6], 16
    $region29: #{tpu_custom_call.1} parent=1 // pred_fallthru
      _
    // Predicated region
    $region30: #{tpu_custom_call.1} parent=1 // pred_check
      _
    $region31: #{tpu_custom_call.1} parent=1 // pred_check_branch
      %66 = sbr.rel (0) target = $region33
    $region32: #{tpu_custom_call.1} parent=1 // pred_region
      %68 = dma.done [#allocation9], 16
    $region33: #{tpu_custom_call.1} parent=1 // pred_fallthru
      _
    // Predicated region
    $region34: #{tpu_custom_call.1} parent=1 // pred_check
      _
    $region35: #{tpu_custom_call.1} parent=1 // pred_check_branch
      %70 = sbr.rel (0) target = $region37
    $region36: #{tpu_custom_call.1} parent=1 // pred_region
      %72 = dma.done [#allocation9], 16
    $region37: #{tpu_custom_call.1} parent=1 // pred_fallthru
      _
    %73 = sfence
    %s74 = sld [smem:[#allocation2]]
    %v75 = vstv %s74
    %s76 = sld [smem:[#allocation8]]
    %v77 = vstv %s76
    %s78 = sld [smem:[#allocation7]]
    %v79 = vld [vmem:[#allocation3] sm:$0xff]
    %v80 = vstv %s78
    %v81 = vmul.f32 %v80, %v79
    %v82 = vadd.f32 %v77, %v81
    %s83 = sld [smem:[#allocation7 + $0x1]]
    %s84 = scalar_lea.vmem [#allocation3], 8
    %v85 = vld [vmem:[%s84] sm:$0xff]
    %v86 = vstv %s83
    %v87 = vmul.f32 %v86, %v85
    %v88 = vadd.f32 %v82, %v87
    %s89 = sld [smem:[#allocation7 + $0x2]]
    %s90 = scalar_lea.vmem [#allocation3], 16
    %v91 = vld [vmem:[%s90] sm:$0xff]
    %v92 = vstv %s89
    %v93 = vmul.f32 %v92, %v91
    %v94 = vadd.f32 %v88, %v93
    %s95 = sld [smem:[#allocation7 + $0x3]]
    %s96 = scalar_lea.vmem [#allocation3], 24
    %v97 = vld [vmem:[%s96] sm:$0xff]
    %v98 = vstv %s95
    %v99 = vmul.f32 %v98, %v97
    %v100 = vadd.f32 %v94, %v99
    %s101 = sld [smem:[#allocation7 + $0x4]]
    %s102 = scalar_lea.vmem [#allocation3], 32
    %v103 = vld [vmem:[%s102] sm:$0xff]
    %v104 = vstv %s101
    %v105 = vmul.f32 %v104, %v103
    %v106 = vadd.f32 %v100, %v105
    %s107 = sld [smem:[#allocation7 + $0x5]]
    %s108 = scalar_lea.vmem [#allocation3], 40
    %v109 = vld [vmem:[%s108] sm:$0xff]
    %v110 = vstv %s107
    %v111 = vmul.f32 %v110, %v109
    %v112 = vadd.f32 %v106, %v111
    %v113 = vmax.f32 %v112, 0.0
    %s114 = sld [smem:[#allocation10]]
    %v115 = vstv %s114
    %v116 = vmul.f32 %v115, %v113
    %v117 = vadd.f32 %v75, %v116
    %s118 = sld [smem:[#allocation8 + $0x1]]
    %v119 = vstv %s118
    %s120 = sld [smem:[#allocation7 + $0x6]]
    %v121 = vstv %s120
    %v122 = vmul.f32 %v121, %v79
    %v123 = vadd.f32 %v119, %v122
    %s124 = sld [smem:[#allocation7 + $0x7]]
    %v125 = vstv %s124
    %v126 = vmul.f32 %v125, %v85
    %v127 = vadd.f32 %v123, %v126
    %s128 = sld [smem:[#allocation7 + $0x8]]
    %v129 = vstv %s128
    %v130 = vmul.f32 %v129, %v91
    %v131 = vadd.f32 %v127, %v130
    %s132 = sld [smem:[#allocation7 + $0x9]]
    %v133 = vstv %s132
    %v134 = vmul.f32 %v133, %v97
    %v135 = vadd.f32 %v131, %v134
    %s136 = sld [smem:[#allocation7 + $0xa]]
    %v137 = vstv %s136
    %v138 = vmul.f32 %v137, %v103
    %v139 = vadd.f32 %v135, %v138
    %s140 = sld [smem:[#allocation7 + $0xb]]
    %v141 = vstv %s140
    %v142 = vmul.f32 %v141, %v109
    %v143 = vadd.f32 %v139, %v142
    %v144 = vmax.f32 %v143, 0.0
    %s145 = sld [smem:[#allocation10 + $0x1]]
    %v146 = vstv %s145
    %v147 = vmul.f32 %v146, %v144
    %v148 = vadd.f32 %v117, %v147
    %s149 = sld [smem:[#allocation8 + $0x2]]
    %v150 = vstv %s149
    %s151 = sld [smem:[#allocation7 + $0xc]]
    %v152 = vstv %s151
    %v153 = vmul.f32 %v152, %v79
    %v154 = vadd.f32 %v150, %v153
    %s155 = sld [smem:[#allocation7 + $0xd]]
    %v156 = vstv %s155
    %v157 = vmul.f32 %v156, %v85
    %v158 = vadd.f32 %v154, %v157
    %s159 = sld [smem:[#allocation7 + $0xe]]
    %v160 = vstv %s159
    %v161 = vmul.f32 %v160, %v91
    %v162 = vadd.f32 %v158, %v161
    %s163 = sld [smem:[#allocation7 + $0xf]]
    %v164 = vstv %s163
    %v165 = vmul.f32 %v164, %v97
    %v166 = vadd.f32 %v162, %v165
    %s167 = sld [smem:[#allocation7 + $0x10]]
    %v168 = vstv %s167
    %v169 = vmul.f32 %v168, %v103
    %v170 = vadd.f32 %v166, %v169
    %s171 = sld [smem:[#allocation7 + $0x11]]
    %v172 = vstv %s171
    %v173 = vmul.f32 %v172, %v109
    %v174 = vadd.f32 %v170, %v173
    %v175 = vmax.f32 %v174, 0.0
    %s176 = sld [smem:[#allocation10 + $0x2]]
    %v177 = vstv %s176
    %v178 = vmul.f32 %v177, %v175
    %v179 = vadd.f32 %v148, %v178
    %s180 = sld [smem:[#allocation8 + $0x3]]
    %v181 = vstv %s180
    %s182 = sld [smem:[#allocation7 + $0x12]]
    %v183 = vstv %s182
    %v184 = vmul.f32 %v183, %v79
    %v185 = vadd.f32 %v181, %v184
    %s186 = sld [smem:[#allocation7 + $0x13]]
    %v187 = vstv %s186
    %v188 = vmul.f32 %v187, %v85
    %v189 = vadd.f32 %v185, %v188
    %s190 = sld [smem:[#allocation7 + $0x14]]
    %v191 = vstv %s190
    %v192 = vmul.f32 %v191, %v91
    %v193 = vadd.f32 %v189, %v192
    %s194 = sld [smem:[#allocation7 + $0x15]]
    %v195 = vstv %s194
    %v196 = vmul.f32 %v195, %v97
    %v197 = vadd.f32 %v193, %v196
    %s198 = sld [smem:[#allocation7 + $0x16]]
    %v199 = vstv %s198
    %v200 = vmul.f32 %v199, %v103
    %v201 = vadd.f32 %v197, %v200
    %s202 = sld [smem:[#allocation7 + $0x17]]
    %v203 = vstv %s202
    %v204 = vmul.f32 %v203, %v109
    %v205 = vadd.f32 %v201, %v204
    %v206 = vmax.f32 %v205, 0.0
    %s207 = sld [smem:[#allocation10 + $0x3]]
    %v208 = vstv %s207
    %v209 = vmul.f32 %v208, %v206
    %v210 = vadd.f32 %v179, %v209
    %v211 = vmul.f32 %v210, 0.5
    %v212 = vtanh.pop %v211
    %v213 = vmul.f32 %v212, 0.5
    %v214 = vadd.f32 %v213, 0.5
    %215 = vst [vmem:[#allocation11] sm:$0xff] %v214
    // Predicated region
    $region38: #{tpu_custom_call.1} parent=1 // pred_check
      _
    $region39: #{tpu_custom_call.1} parent=1 // pred_check_branch
      %217 = sbr.rel (0) target = $region41
    $region40: #{tpu_custom_call.1} parent=1 // pred_region
      %219 = vsyncadd [#allocation5], 0
      %s221 = sshll.u32 [#allocation11], 4
      %s222 = int_to_ptr.vmem [resolvable:$true] %s221
      %s223 = sshll.u32 %s5, 4
      %s224 = int_to_ptr.hbm [resolvable:$true] %s223
      %226 = dma.vmem_to_hbm [thread:$0]  %s222, 128, %s224, [#allocation5]
    $region41: #{tpu_custom_call.1} parent=1 // pred_fallthru
      _
    // Predicated region
    $region42: #{tpu_custom_call.1} parent=1 // pred_check
      _
    $region43: #{tpu_custom_call.1} parent=1 // pred_check_branch
      %228 = sbr.rel (0) target = $region45
    $region44: #{tpu_custom_call.1} parent=1 // pred_region
      %230 = dma.done [#allocation5], 128
    $region45: #{tpu_custom_call.1} parent=1 // pred_fallthru
      _
    %231 = vsyncpa [#allocation4], 1
    %232 = vsyncpa [#allocation5], 1
    %233 = vsyncpa [#allocation6], 1
    %234 = vsyncpa [#allocation9], 1

</llo_original>
